<compile_context>
chip_gen: v7x
topology: tpu7x:2x2x1
jax: 0.10.0
libtpu: 0.0.40
codegen_flags: <defaults>
</compile_context>

<pallas_src>
import jax
import jax.numpy as jnp
from jax import lax
from jax.experimental import pallas as pl
from jax.experimental.pallas import tpu as pltpu

_SQRT_HALF = 0.7071067811865476


def _gelu_exact(v):
    # PyTorch nn.GELU() default is the exact erf formulation.
    return 0.5 * v * (1.0 + lax.erf(v * _SQRT_HALF))


def mixer_block_kernel(
    x_ref,       # (TB, P, C)  f32 activations
    gamma_ref,   # (1, C)      f32 shared LayerNorm weight
    beta_ref,    # (1, C)      f32 shared LayerNorm bias
    tw1_ref,     # (Hp, P)     bf16 token-mix Linear1 weight (torch (out,in) layout)
    tb1_ref,     # (Hp, 1)     f32  token-mix Linear1 bias (column vector)
    tw2_ref,     # (P, Hp)     bf16 token-mix Linear2 weight
    tb2_ref,     # (P, 1)      f32  token-mix Linear2 bias (column vector)
    cw1_ref,     # (C, Hc)     bf16 channel-mix Linear1 weight (pre-transposed)
    cb1_ref,     # (1, Hc)     f32
    cw2_ref,     # (Hc, C)     bf16 channel-mix Linear2 weight (pre-transposed)
    cb2_ref,     # (1, C)      f32
    o_ref,       # (TB, P, C)
    xr_ref,      # (TB, P, C)  f32 VMEM scratch: x after the token-mix residual
):
    TB, P, C = x_ref.shape

    gamma = gamma_ref[...].astype(jnp.float32)   # (1, C)
    beta = beta_ref[...].astype(jnp.float32)     # (1, C)

    def layer_norm(v):
        # Fused LN: single reduction pass, gamma folded into the scale so the
        # elementwise tail is one mul + one add per element.
        mu = jnp.mean(v, axis=-1, keepdims=True)
        var = jnp.mean(v * v, axis=-1, keepdims=True) - mu * mu
        scale = lax.rsqrt(var + 1e-5) * gamma
        shift = beta - mu * scale
        return v * scale + shift

    x = x_ref[...].astype(jnp.float32)           # (TB, P, C)

    # ----- token-mixing branch: contract over P, no XLU transposes -----
    x1 = layer_norm(x).astype(jnp.bfloat16)      # (TB, P, C)
    tw1 = tw1_ref[...]                           # (Hp, P) bf16
    tw2 = tw2_ref[...]                           # (P, Hp) bf16
    tb1 = tb1_ref[...].astype(jnp.float32)       # (Hp, 1)
    tb2 = tb2_ref[...].astype(jnp.float32)       # (P, 1)
    dn = (((1,), (0,)), ((), ()))                # contract lhs[-1] with rhs[0]

    for i in range(TB):                          # TB is a small static constant
        # h[j, c] = sum_p tw1[j, p] * x1[i, p, c] + tb1[j]
        h = lax.dot_general(tw1, x1[i], dn,
                            preferred_element_type=jnp.float32)      # (Hp, C)
        h = _gelu_exact(h + tb1).astype(jnp.bfloat16)
        # y[p, c] = sum_j tw2[p, j] * h[j, c] + tb2[p]
        y = lax.dot_general(tw2, h, dn,
                            preferred_element_type=jnp.float32)      # (P, C)
        xr_ref[i] = x[i] + y + tb2               # residual after token mixing

    # ----- channel-mixing branch: whole (TB*P, C) slab in one matmul pair -----
    xr = xr_ref[...]                                                  # (TB, P, C)
    x2 = layer_norm(xr).reshape(TB * P, C).astype(jnp.bfloat16)
    h2 = jnp.dot(x2, cw1_ref[...],
                 preferred_element_type=jnp.float32)
    h2 = _gelu_exact(h2 + cb1_ref[...].astype(jnp.float32))
    h2 = h2.astype(jnp.bfloat16)                                      # (TB*P, Hc)
    y2 = jnp.dot(h2, cw2_ref[...],
                 preferred_element_type=jnp.float32)
    y2 = y2 + cb2_ref[...].astype(jnp.float32)                        # (TB*P, C)

    o_ref[...] = (xr + y2.reshape(TB, P, C)).astype(o_ref.dtype)


def _pick_tb(B, P):
    """Batch elements per grid step.

    Amortize per-step overhead (target up to ~1024 LN rows / step) while
    keeping the grid length >= 2 when B >= 2 (keeps both v7x TensorCores
    busy) and requiring TB | B so every block is full.
    """
    cap = max(1, 1024 // max(P, 8))
    cap = min(cap, B)
    if B >= 2:
        cap = min(cap, max(1, B // 2))
    tb = 1
    for d in range(1, cap + 1):
        if B % d == 0:
            tb = d
    return tb


def _vmem_limit_bytes(tb, P, C, Hp, Hc):
    blk = tb * P * C * 4                                  # one f32 activation block
    w = 2 * (Hp * P + P * Hp + C * Hc + Hc * C)           # bf16 weights
    b = 4 * (Hp + P + Hc + 3 * C)                         # f32 biases + gamma/beta
    tmp = 4 * (tb * P * Hc + tb * max(Hp, P) * C + 2 * tb * P * C)  # temporaries
    est = 2 * (2 * blk + w + b) + blk + 2 * tmp + (4 << 20)
    return int(min(max(est, 16 << 20), 64 << 20))         # stay within v7x physical


def mixer_block(x, params, *, tb=None):
    """x: (B, P, C) float32.  params: dict of weights (see init_params)."""
    B, P, C = x.shape
    Hp = params["tw1"].shape[0]
    Hc = params["cw1"].shape[1]
    if tb is None:
        tb = _pick_tb(B, P)
    assert B % tb == 0, f"tb={tb} must divide B={B}"
    grid = (B // tb,)

    def full_spec(arr):
        nd = arr.ndim
        return pl.BlockSpec(arr.shape, lambda g, _nd=nd: (0,) * _nd)

    cost = pl.CostEstimate(
        flops=int(B * (4 * P * Hp * C + 4 * P * C * Hc) + 12 * B * P * C),
        transcendentals=int(B * (Hp * C + P * Hc)),
        bytes_accessed=int(
            2 * B * P * C * 4
            + 2 * (Hp * P + P * Hp + C * Hc + Hc * C)
            + 4 * (Hp + P + Hc + 3 * C)),
    )

    return pl.pallas_call(
        mixer_block_kernel,
        out_shape=jax.ShapeDtypeStruct((B, P, C), x.dtype),
        grid_spec=pltpu.PrefetchScalarGridSpec(
            num_scalar_prefetch=0,
            grid=grid,
            in_specs=[
                pl.BlockSpec((tb, P, C), lambda g: (g, 0, 0)),   # x
                full_spec(params["gamma"]),
                full_spec(params["beta"]),
                full_spec(params["tw1"]),
                full_spec(params["tb1"]),
                full_spec(params["tw2"]),
                full_spec(params["tb2"]),
                full_spec(params["cw1"]),
                full_spec(params["cb1"]),
                full_spec(params["cw2"]),
                full_spec(params["cb2"]),
            ],
            out_specs=pl.BlockSpec((tb, P, C), lambda g: (g, 0, 0)),
            scratch_shapes=[pltpu.VMEM((tb, P, C), jnp.float32)],
        ),
        compiler_params=pltpu.CompilerParams(
            dimension_semantics=("parallel",),
            vmem_limit_bytes=_vmem_limit_bytes(tb, P, C, Hp, Hc),
        ),
        cost_estimate=cost,
    )(
        x,
        params["gamma"], params["beta"],
        params["tw1"], params["tb1"], params["tw2"], params["tb2"],
        params["cw1"], params["cb1"], params["cw2"], params["cb2"],
    )


def init_params(key, n_patches, feature_dim, expansion_ratio):
    """Deterministic synthetic parameters matching MixerBlock's shapes.

    The PyTorch module reuses a single self.layer_norm for both norms, so
    gamma/beta are intentionally shared.  Token-mix weights are kept in native
    torch (out, in) layout; channel-mix weights are pre-transposed to (in, out)
    so the kernel computes x @ W.  Matmul weights are stored in bfloat16.
    """
    P, C = n_patches, feature_dim
    Hp = int(expansion_ratio * n_patches)
    Hc = int(expansion_ratio * feature_dim)
    ks = jax.random.split(key, 10)
    s = 0.02
    f32, bf16 = jnp.float32, jnp.bfloat16
    return {
        "gamma": (1.0 + s * jax.random.normal(ks[0], (1, C))).astype(f32),
        "beta": (s * jax.random.normal(ks[1], (1, C))).astype(f32),
        # token mix DenseBlock(dim=P): Linear(P -> Hp), Linear(Hp -> P)
        "tw1": (s * jax.random.normal(ks[2], (Hp, P))).astype(bf16),
        "tb1": (s * jax.random.normal(ks[3], (Hp, 1))).astype(f32),
        "tw2": (s * jax.random.normal(ks[4], (P, Hp))).astype(bf16),
        "tb2": (s * jax.random.normal(ks[5], (P, 1))).astype(f32),
        # channel mix DenseBlock(dim=C): Linear(C -> Hc), Linear(Hc -> C)
        "cw1": (s * jax.random.normal(ks[6], (C, Hc))).astype(bf16),
        "cb1": (s * jax.random.normal(ks[7], (1, Hc))).astype(f32),
        "cw2": (s * jax.random.normal(ks[8], (Hc, C))).astype(bf16),
        "cb2": (s * jax.random.normal(ks[9], (1, C))).astype(f32),
    }


def mixer_block_ref(x, p):
    """Pure-JAX f32 reference mirroring the PyTorch forward (eval, dropout=0)."""
    gamma = p["gamma"][0]
    beta = p["beta"][0]

    def ln(v):
        mu = jnp.mean(v, axis=-1, keepdims=True)
        var = jnp.mean((v - mu) ** 2, axis=-1, keepdims=True)
        return (v - mu) / jnp.sqrt(var + 1e-5) * gamma + beta

    gelu = lambda v: 0.5 * v * (1.0 + lax.erf(v * _SQRT_HALF))

    tw1 = p["tw1"].astype(jnp.float32)   # (Hp, P)
    tw2 = p["tw2"].astype(jnp.float32)   # (P, Hp)
    cw1 = p["cw1"].astype(jnp.float32)   # (C, Hc)
    cw2 = p["cw2"].astype(jnp.float32)   # (Hc, C)

    x = x.astype(jnp.float32)
    x1 = ln(x)
    x1 = jnp.swapaxes(x1, 1, 2)                                    # (B, C, P)
    x1 = gelu(x1 @ tw1.T + p["tb1"][:, 0]) @ tw2.T + p["tb2"][:, 0]
    x1 = jnp.swapaxes(x1, 1, 2)                                    # (B, P, C)
    x = x + x1
    x2 = ln(x)
    x2 = gelu(x2 @ cw1 + p["cb1"][0]) @ cw2 + p["cb2"][0]
    return x + x2


if __name__ == "__main__":
    # MixerBlock(img_size=16, patch_size=4, feature_dim=32, expansion_ratio=4)
    img_size, patch_size, feature_dim, expansion_ratio = 16, 4, 32, 4
    n_patches = (img_size // patch_size) ** 2    # 16
    batch = 2

    key = jax.random.PRNGKey(0)
    kx, kp = jax.random.split(key)
    x = jax.random.normal(kx, (batch, n_patches, feature_dim), dtype=jnp.float32)
    params = init_params(kp, n_patches, feature_dim, expansion_ratio)

    out = jax.block_until_ready(mixer_block(x, params))
    ref = mixer_block_ref(x, params)

    assert out.shape == (batch, n_patches, feature_dim)
    max_err = float(jnp.max(jnp.abs(out - ref)))
    # bf16 MXU inputs vs f32 reference -> loosened tolerance.
    assert jnp.allclose(out, ref, atol=2e-2, rtol=2e-2), (
        f"mismatch vs reference, max abs err = {max_err}")

    print("KERNEL_OK")
</pallas_src>

<mosaic_0001>
module attributes {stable_mosaic.version = 11 : i64} {
  func.func @mixer_block_kernel(%arg0: i32, %arg1: memref<1x16x32xf32, #tpu.memory_space<vmem>>, %arg2: memref<1x32xf32, #tpu.memory_space<vmem>>, %arg3: memref<1x32xf32, #tpu.memory_space<vmem>>, %arg4: memref<64x16xbf16, #tpu.memory_space<vmem>>, %arg5: memref<64x1xf32, #tpu.memory_space<vmem>>, %arg6: memref<16x64xbf16, #tpu.memory_space<vmem>>, %arg7: memref<16x1xf32, #tpu.memory_space<vmem>>, %arg8: memref<32x128xbf16, #tpu.memory_space<vmem>>, %arg9: memref<1x128xf32, #tpu.memory_space<vmem>>, %arg10: memref<128x32xbf16, #tpu.memory_space<vmem>>, %arg11: memref<1x32xf32, #tpu.memory_space<vmem>>, %arg12: memref<1x16x32xf32, #tpu.memory_space<vmem>>, %arg13: memref<1x16x32xf32, #tpu.memory_space<vmem>>) attributes {dimension_semantics = [#tpu.dimension_semantics<parallel>], iteration_bounds = array<i64: 2>, scalar_prefetch = 0 : i64, scratch_operands = 1 : i64, tpu.core_type = #tpu.core_type<tc>, window_params = [{transform_indices = @transform_0, window_bounds = array<i64: 1, 16, 32>}, {pipeline_mode = #tpu.pipeline_mode<synchronous>, transform_indices = @transform_1, window_bounds = array<i64: 1, 32>}, {pipeline_mode = #tpu.pipeline_mode<synchronous>, transform_indices = @transform_2, window_bounds = array<i64: 1, 32>}, {pipeline_mode = #tpu.pipeline_mode<synchronous>, transform_indices = @transform_3, window_bounds = array<i64: 64, 16>}, {pipeline_mode = #tpu.pipeline_mode<synchronous>, transform_indices = @transform_4, window_bounds = array<i64: 64, 1>}, {pipeline_mode = #tpu.pipeline_mode<synchronous>, transform_indices = @transform_5, window_bounds = array<i64: 16, 64>}, {pipeline_mode = #tpu.pipeline_mode<synchronous>, transform_indices = @transform_6, window_bounds = array<i64: 16, 1>}, {pipeline_mode = #tpu.pipeline_mode<synchronous>, transform_indices = @transform_7, window_bounds = array<i64: 32, 128>}, {pipeline_mode = #tpu.pipeline_mode<synchronous>, transform_indices = @transform_8, window_bounds = array<i64: 1, 128>}, {pipeline_mode = #tpu.pipeline_mode<synchronous>, transform_indices = @transform_9, window_bounds = array<i64: 128, 32>}, {pipeline_mode = #tpu.pipeline_mode<synchronous>, transform_indices = @transform_10, window_bounds = array<i64: 1, 32>}, {transform_indices = @transform_11, window_bounds = array<i64: 1, 16, 32>}]} {
    %c0 = arith.constant 0 : index
    %c0_0 = arith.constant 0 : index
    %0 = vector.load %arg2[%c0, %c0_0] : memref<1x32xf32, #tpu.memory_space<vmem>>, vector<1x32xf32>
    %c0_1 = arith.constant 0 : index
    %c0_2 = arith.constant 0 : index
    %1 = vector.load %arg3[%c0_1, %c0_2] : memref<1x32xf32, #tpu.memory_space<vmem>>, vector<1x32xf32>
    %c0_3 = arith.constant 0 : index
    %c0_4 = arith.constant 0 : index
    %c0_5 = arith.constant 0 : index
    %2 = vector.load %arg1[%c0_3, %c0_4, %c0_5] : memref<1x16x32xf32, #tpu.memory_space<vmem>>, vector<1x16x32xf32>
    %cst = arith.constant dense<0.000000e+00> : vector<1x16xf32>
    %3 = vector.multi_reduction <add>, %2, %cst [2] : vector<1x16x32xf32> to vector<1x16xf32>
    %4 = vector.shape_cast %3 : vector<1x16xf32> to vector<1x16x1xf32>
    %cst_6 = arith.constant 3.200000e+01 : f32
    %5 = vector.broadcast %cst_6 : f32 to vector<1x16x1xf32>
    %6 = arith.divf %4, %5 : vector<1x16x1xf32>
    %7 = arith.mulf %2, %2 : vector<1x16x32xf32>
    %cst_7 = arith.constant dense<0.000000e+00> : vector<1x16xf32>
    %8 = vector.multi_reduction <add>, %7, %cst_7 [2] : vector<1x16x32xf32> to vector<1x16xf32>
    %9 = vector.shape_cast %8 : vector<1x16xf32> to vector<1x16x1xf32>
    %cst_8 = arith.constant 3.200000e+01 : f32
    %10 = vector.broadcast %cst_8 : f32 to vector<1x16x1xf32>
    %11 = arith.divf %9, %10 : vector<1x16x1xf32>
    %12 = arith.mulf %6, %6 : vector<1x16x1xf32>
    %13 = arith.subf %11, %12 : vector<1x16x1xf32>
    %cst_9 = arith.constant 9.99999974E-6 : f32
    %14 = vector.broadcast %cst_9 : f32 to vector<1x16x1xf32>
    %15 = arith.addf %13, %14 : vector<1x16x1xf32>
    %16 = math.rsqrt %15 : vector<1x16x1xf32>
    %17 = vector.shape_cast %0 : vector<1x32xf32> to vector<1x1x32xf32>
    %18 = vector.broadcast %16 : vector<1x16x1xf32> to vector<1x16x32xf32>
    %19 = vector.broadcast %17 : vector<1x1x32xf32> to vector<1x16x32xf32>
    %20 = arith.mulf %18, %19 : vector<1x16x32xf32>
    %21 = vector.broadcast %6 : vector<1x16x1xf32> to vector<1x16x32xf32>
    %22 = arith.mulf %21, %20 : vector<1x16x32xf32>
    %23 = vector.shape_cast %1 : vector<1x32xf32> to vector<1x1x32xf32>
    %24 = vector.broadcast %23 : vector<1x1x32xf32> to vector<1x16x32xf32>
    %25 = arith.subf %24, %22 : vector<1x16x32xf32>
    %26 = arith.mulf %2, %20 : vector<1x16x32xf32>
    %27 = arith.addf %26, %25 : vector<1x16x32xf32>
    %28 = arith.truncf %27 : vector<1x16x32xf32> to vector<1x16x32xbf16>
    %c0_10 = arith.constant 0 : index
    %c0_11 = arith.constant 0 : index
    %29 = vector.load %arg4[%c0_10, %c0_11] : memref<64x16xbf16, #tpu.memory_space<vmem>>, vector<64x16xbf16>
    %c0_12 = arith.constant 0 : index
    %c0_13 = arith.constant 0 : index
    %30 = vector.load %arg6[%c0_12, %c0_13] : memref<16x64xbf16, #tpu.memory_space<vmem>>, vector<16x64xbf16>
    %c0_14 = arith.constant 0 : index
    %c0_15 = arith.constant 0 : index
    %31 = vector.load %arg5[%c0_14, %c0_15] : memref<64x1xf32, #tpu.memory_space<vmem>>, vector<64x1xf32>
    %c0_16 = arith.constant 0 : index
    %c0_17 = arith.constant 0 : index
    %32 = vector.load %arg7[%c0_16, %c0_17] : memref<16x1xf32, #tpu.memory_space<vmem>>, vector<16x1xf32>
    %33 = vector.shape_cast %28 : vector<1x16x32xbf16> to vector<16x32xbf16>
    %cst_18 = arith.constant dense<0.000000e+00> : vector<64x32xf32>
    %34 = tpu.matmul %29, %33, %cst_18 {dimension_numbers = #tpu.dot_dimension_numbers<[1], [0], [0], [1], [0, 0, 1, 1], [], []>} : vector<64x16xbf16>, vector<16x32xbf16>, vector<64x32xf32> -> vector<64x32xf32>
    %35 = vector.broadcast %31 : vector<64x1xf32> to vector<64x32xf32>
    %36 = arith.addf %34, %35 : vector<64x32xf32>
    %cst_19 = arith.constant 5.000000e-01 : f32
    %37 = vector.broadcast %cst_19 : f32 to vector<64x32xf32>
    %38 = arith.mulf %37, %36 : vector<64x32xf32>
    %cst_20 = arith.constant 0.707106769 : f32
    %39 = vector.broadcast %cst_20 : f32 to vector<64x32xf32>
    %40 = arith.mulf %36, %39 : vector<64x32xf32>
    %41 = math.erf %40 : vector<64x32xf32>
    %cst_21 = arith.constant 1.000000e+00 : f32
    %42 = vector.broadcast %cst_21 : f32 to vector<64x32xf32>
    %43 = arith.addf %42, %41 : vector<64x32xf32>
    %44 = arith.mulf %38, %43 : vector<64x32xf32>
    %45 = arith.truncf %44 : vector<64x32xf32> to vector<64x32xbf16>
    %cst_22 = arith.constant dense<0.000000e+00> : vector<16x32xf32>
    %46 = tpu.matmul %30, %45, %cst_22 {dimension_numbers = #tpu.dot_dimension_numbers<[1], [0], [0], [1], [0, 0, 1, 1], [], []>} : vector<16x64xbf16>, vector<64x32xbf16>, vector<16x32xf32> -> vector<16x32xf32>
    %47 = vector.shape_cast %2 : vector<1x16x32xf32> to vector<16x32xf32>
    %48 = arith.addf %47, %46 : vector<16x32xf32>
    %49 = vector.broadcast %32 : vector<16x1xf32> to vector<16x32xf32>
    %50 = arith.addf %48, %49 : vector<16x32xf32>
    %c0_23 = arith.constant 0 : index
    %c0_24 = arith.constant 0 : index
    %c0_25 = arith.constant 0 : index
    %51 = vector.load %arg13[%c0_23, %c0_24, %c0_25] : memref<1x16x32xf32, #tpu.memory_space<vmem>>, vector<1x16x32xf32>
    %52 = vector.shape_cast %51 : vector<1x16x32xf32> to vector<16x32xf32>
    %53 = vector.shape_cast %50 : vector<16x32xf32> to vector<1x16x32xf32>
    tpu.vector_store %arg13[%c0_23, %c0_24, %c0_25], %53 {strides = array<i32>} : memref<1x16x32xf32, #tpu.memory_space<vmem>>, vector<1x16x32xf32>,
    %c0_26 = arith.constant 0 : index
    %c0_27 = arith.constant 0 : index
    %c0_28 = arith.constant 0 : index
    %54 = vector.load %arg13[%c0_26, %c0_27, %c0_28] : memref<1x16x32xf32, #tpu.memory_space<vmem>>, vector<1x16x32xf32>
    %cst_29 = arith.constant dense<0.000000e+00> : vector<1x16xf32>
    %55 = vector.multi_reduction <add>, %54, %cst_29 [2] : vector<1x16x32xf32> to vector<1x16xf32>
    %56 = vector.shape_cast %55 : vector<1x16xf32> to vector<1x16x1xf32>
    %cst_30 = arith.constant 3.200000e+01 : f32
    %57 = vector.broadcast %cst_30 : f32 to vector<1x16x1xf32>
    %58 = arith.divf %56, %57 : vector<1x16x1xf32>
    %59 = arith.mulf %54, %54 : vector<1x16x32xf32>
    %cst_31 = arith.constant dense<0.000000e+00> : vector<1x16xf32>
    %60 = vector.multi_reduction <add>, %59, %cst_31 [2] : vector<1x16x32xf32> to vector<1x16xf32>
    %61 = vector.shape_cast %60 : vector<1x16xf32> to vector<1x16x1xf32>
    %cst_32 = arith.constant 3.200000e+01 : f32
    %62 = vector.broadcast %cst_32 : f32 to vector<1x16x1xf32>
    %63 = arith.divf %61, %62 : vector<1x16x1xf32>
    %64 = arith.mulf %58, %58 : vector<1x16x1xf32>
    %65 = arith.subf %63, %64 : vector<1x16x1xf32>
    %cst_33 = arith.constant 9.99999974E-6 : f32
    %66 = vector.broadcast %cst_33 : f32 to vector<1x16x1xf32>
    %67 = arith.addf %65, %66 : vector<1x16x1xf32>
    %68 = math.rsqrt %67 : vector<1x16x1xf32>
    %69 = vector.shape_cast %0 : vector<1x32xf32> to vector<1x1x32xf32>
    %70 = vector.broadcast %68 : vector<1x16x1xf32> to vector<1x16x32xf32>
    %71 = vector.broadcast %69 : vector<1x1x32xf32> to vector<1x16x32xf32>
    %72 = arith.mulf %70, %71 : vector<1x16x32xf32>
    %73 = vector.broadcast %58 : vector<1x16x1xf32> to vector<1x16x32xf32>
    %74 = arith.mulf %73, %72 : vector<1x16x32xf32>
    %75 = vector.shape_cast %1 : vector<1x32xf32> to vector<1x1x32xf32>
    %76 = vector.broadcast %75 : vector<1x1x32xf32> to vector<1x16x32xf32>
    %77 = arith.subf %76, %74 : vector<1x16x32xf32>
    %78 = arith.mulf %54, %72 : vector<1x16x32xf32>
    %79 = arith.addf %78, %77 : vector<1x16x32xf32>
    %80 = vector.shape_cast %79 : vector<1x16x32xf32> to vector<16x32xf32>
    %81 = arith.truncf %80 : vector<16x32xf32> to vector<16x32xbf16>
    %c0_34 = arith.constant 0 : index
    %c0_35 = arith.constant 0 : index
    %82 = vector.load %arg8[%c0_34, %c0_35] : memref<32x128xbf16, #tpu.memory_space<vmem>>, vector<32x128xbf16>
    %cst_36 = arith.constant dense<0.000000e+00> : vector<16x128xf32>
    %83 = tpu.matmul %81, %82, %cst_36 {dimension_numbers = #tpu.dot_dimension_numbers<[1], [0], [0], [1], [0, 0, 1, 1], [], []>} : vector<16x32xbf16>, vector<32x128xbf16>, vector<16x128xf32> -> vector<16x128xf32>
    %c0_37 = arith.constant 0 : index
    %c0_38 = arith.constant 0 : index
    %84 = vector.load %arg9[%c0_37, %c0_38] : memref<1x128xf32, #tpu.memory_space<vmem>>, vector<1x128xf32>
    %85 = vector.broadcast %84 : vector<1x128xf32> to vector<16x128xf32>
    %86 = arith.addf %83, %85 : vector<16x128xf32>
    %cst_39 = arith.constant 5.000000e-01 : f32
    %87 = vector.broadcast %cst_39 : f32 to vector<16x128xf32>
    %88 = arith.mulf %87, %86 : vector<16x128xf32>
    %cst_40 = arith.constant 0.707106769 : f32
    %89 = vector.broadcast %cst_40 : f32 to vector<16x128xf32>
    %90 = arith.mulf %86, %89 : vector<16x128xf32>
    %91 = math.erf %90 : vector<16x128xf32>
    %cst_41 = arith.constant 1.000000e+00 : f32
    %92 = vector.broadcast %cst_41 : f32 to vector<16x128xf32>
    %93 = arith.addf %92, %91 : vector<16x128xf32>
    %94 = arith.mulf %88, %93 : vector<16x128xf32>
    %95 = arith.truncf %94 : vector<16x128xf32> to vector<16x128xbf16>
    %c0_42 = arith.constant 0 : index
    %c0_43 = arith.constant 0 : index
    %96 = vector.load %arg10[%c0_42, %c0_43] : memref<128x32xbf16, #tpu.memory_space<vmem>>, vector<128x32xbf16>
    %cst_44 = arith.constant dense<0.000000e+00> : vector<16x32xf32>
    %97 = tpu.matmul %95, %96, %cst_44 {dimension_numbers = #tpu.dot_dimension_numbers<[1], [0], [0], [1], [0, 0, 1, 1], [], []>} : vector<16x128xbf16>, vector<128x32xbf16>, vector<16x32xf32> -> vector<16x32xf32>
    %c0_45 = arith.constant 0 : index
    %c0_46 = arith.constant 0 : index
    %98 = vector.load %arg11[%c0_45, %c0_46] : memref<1x32xf32, #tpu.memory_space<vmem>>, vector<1x32xf32>
    %99 = vector.broadcast %98 : vector<1x32xf32> to vector<16x32xf32>
    %100 = arith.addf %97, %99 : vector<16x32xf32>
    %101 = vector.shape_cast %100 : vector<16x32xf32> to vector<1x16x32xf32>
    %102 = arith.addf %54, %101 : vector<1x16x32xf32>
    %c0_47 = arith.constant 0 : index
    %c0_48 = arith.constant 0 : index
    %c0_49 = arith.constant 0 : index
    %103 = vector.load %arg12[%c0_47, %c0_48, %c0_49] : memref<1x16x32xf32, #tpu.memory_space<vmem>>, vector<1x16x32xf32>
    tpu.vector_store %arg12[%c0_47, %c0_48, %c0_49], %102 {strides = array<i32>} : memref<1x16x32xf32, #tpu.memory_space<vmem>>, vector<1x16x32xf32>,
    return
  }
  func.func @transform_0(%arg0: i32) -> (i32, i32, i32) {
    %c0_i32 = arith.constant 0 : i32
    %c0_i32_0 = arith.constant 0 : i32
    %c0_i32_1 = arith.constant 0 : i32
    return %arg0, %c0_i32, %c0_i32_0 : i32, i32, i32
  }
  func.func @transform_1(%arg0: i32) -> (i32, i32) {
    %c0_i32 = arith.constant 0 : i32
    %c0_i32_0 = arith.constant 0 : i32
    %c0_i32_1 = arith.constant 0 : i32
    return %c0_i32, %c0_i32_0 : i32, i32
  }
  func.func @transform_2(%arg0: i32) -> (i32, i32) {
    %c0_i32 = arith.constant 0 : i32
    %c0_i32_0 = arith.constant 0 : i32
    %c0_i32_1 = arith.constant 0 : i32
    return %c0_i32, %c0_i32_0 : i32, i32
  }
  func.func @transform_3(%arg0: i32) -> (i32, i32) {
    %c0_i32 = arith.constant 0 : i32
    %c0_i32_0 = arith.constant 0 : i32
    %c0_i32_1 = arith.constant 0 : i32
    return %c0_i32, %c0_i32_0 : i32, i32
  }
  func.func @transform_4(%arg0: i32) -> (i32, i32) {
    %c0_i32 = arith.constant 0 : i32
    %c0_i32_0 = arith.constant 0 : i32
    %c0_i32_1 = arith.constant 0 : i32
    return %c0_i32, %c0_i32_0 : i32, i32
  }
  func.func @transform_5(%arg0: i32) -> (i32, i32) {
    %c0_i32 = arith.constant 0 : i32
    %c0_i32_0 = arith.constant 0 : i32
    %c0_i32_1 = arith.constant 0 : i32
    return %c0_i32, %c0_i32_0 : i32, i32
  }
  func.func @transform_6(%arg0: i32) -> (i32, i32) {
    %c0_i32 = arith.constant 0 : i32
    %c0_i32_0 = arith.constant 0 : i32
    %c0_i32_1 = arith.constant 0 : i32
    return %c0_i32, %c0_i32_0 : i32, i32
  }
  func.func @transform_7(%arg0: i32) -> (i32, i32) {
    %c0_i32 = arith.constant 0 : i32
    %c0_i32_0 = arith.constant 0 : i32
    %c0_i32_1 = arith.constant 0 : i32
    return %c0_i32, %c0_i32_0 : i32, i32
  }
  func.func @transform_8(%arg0: i32) -> (i32, i32) {
    %c0_i32 = arith.constant 0 : i32
    %c0_i32_0 = arith.constant 0 : i32
    %c0_i32_1 = arith.constant 0 : i32
    return %c0_i32, %c0_i32_0 : i32, i32
  }
  func.func @transform_9(%arg0: i32) -> (i32, i32) {
    %c0_i32 = arith.constant 0 : i32
    %c0_i32_0 = arith.constant 0 : i32
    %c0_i32_1 = arith.constant 0 : i32
    return %c0_i32, %c0_i32_0 : i32, i32
  }
  func.func @transform_10(%arg0: i32) -> (i32, i32) {
    %c0_i32 = arith.constant 0 : i32
    %c0_i32_0 = arith.constant 0 : i32
    %c0_i32_1 = arith.constant 0 : i32
    return %c0_i32, %c0_i32_0 : i32, i32
  }
  func.func @transform_11(%arg0: i32) -> (i32, i32, i32) {
    %c0_i32 = arith.constant 0 : i32
    %c0_i32_0 = arith.constant 0 : i32
    %c0_i32_1 = arith.constant 0 : i32
    return %arg0, %c0_i32, %c0_i32_0 : i32, i32, i32
  }
}

</mosaic_0001>

<llo_original>
// kernel: tpu_custom_call.1
$region0: #{tpu_custom_call.1}
  #allocation0 [shape = 'u32[]', space=smem, size = 0x4, offset = 0x4, fixed_abs, tag = 'smem constant byte address 0x4 - core index']
  #allocation1 [shape = 'u32[144,128]{1,0:T(1,128)}', space=vmem, size = 0x12000, scoped, tag = 'internal scratch']
  #allocation2 [shape = 'f32[1,16,32]{2,1,0:T(8,128)}', space=vmem, size = 0x2000, scoped, tag = 'scratch operand']
  %s0 = inlined_call_operand.vmem [shape: f32[2,16,32], index: 0, kind: input, shape index: {}]
  %s1 = inlined_call_operand.vmem [shape: f32[1,32], index: 1, kind: input, shape index: {}]
  %s2 = inlined_call_operand.vmem [shape: f32[1,32], index: 2, kind: input, shape index: {}]
  %s3 = inlined_call_operand.vmem [shape: bf16[64,16], index: 3, kind: input, shape index: {}]
  %s4 = inlined_call_operand.vmem [shape: f32[64,1], index: 4, kind: input, shape index: {}]
  %s5 = inlined_call_operand.vmem [shape: bf16[16,64], index: 5, kind: input, shape index: {}]
  %s6 = inlined_call_operand.vmem [shape: f32[16,1], index: 6, kind: input, shape index: {}]
  %s7 = inlined_call_operand.vmem [shape: bf16[32,128], index: 7, kind: input, shape index: {}]
  %s8 = inlined_call_operand.vmem [shape: f32[1,128], index: 8, kind: input, shape index: {}]
  %s9 = inlined_call_operand.vmem [shape: bf16[128,32], index: 9, kind: input, shape index: {}]
  %s10 = inlined_call_operand.vmem [shape: f32[1,32], index: 10, kind: input, shape index: {}]
  %s11 = inlined_call_operand.hbm [shape: f32[2,16,32], index: 11, kind: output, shape index: {}]
  %s12 = sld [smem:[#allocation0]]
  $region77: #{tpu_custom_call.1} parent=0
    _
  %s14 = ssub.s32 1, %s12
  %s15 = scalar_select 0, %s14, %s12
  $region1: #{tpu_custom_call.1} parent=0
    #allocation3 [shape = 'u8[16384]{0}', space=vmem, size = 0x4000, scoped, tag = 'output window, operand 0']
    #allocation4 [shape = 's32[2]{0}', space=sflag, size = 0x8, scoped, tag = 'scoped memory for tpu_custom_call.1']
    %16 = vsyncpa [#allocation4], 0
    %s17 = scalar_lea.sflag [#allocation4], 1
    %18 = vsyncpa %s17, 0
    loop: start=0, step=1, limit=4
    $region2: #{tpu_custom_call.1} parent=1 // loop_pre_header
      _
    $region3: #{tpu_custom_call.1} parent=1 // loop_header
      %s20 = sphi 0, %s24
      %p21 = scmp.ge.s32.totalorder %s20, 4
      %s30 = sphi 0, %s32
      %s33 = sphi 0, %s30
      %s34 = sphi 0, %s33
      %s50 = sphi 0, %s34
      %s54 = sphi 0, %s54
      %s56 = sphi 0, %s54
      %s57 = sphi 0, %s56
      %s71 = sphi 0, %s57
      %s75 = sphi 0, %s75
      %s77 = sphi 0, %s75
      %s78 = sphi 0, %s77
      %s92 = sphi 0, %s78
      %s96 = sphi 0, %s96
      %s98 = sphi 0, %s96
      %s99 = sphi 0, %s98
      %s113 = sphi 0, %s99
      %s117 = sphi 0, %s117
      %s119 = sphi 0, %s117
      %s120 = sphi 0, %s119
      %s134 = sphi 0, %s120
      %s138 = sphi 0, %s138
      %s140 = sphi 0, %s138
      %s141 = sphi 0, %s140
      %s155 = sphi 0, %s141
      %s159 = sphi 0, %s159
      %s161 = sphi 0, %s159
      %s162 = sphi 0, %s161
      %s176 = sphi 0, %s162
      %s180 = sphi 0, %s180
      %s182 = sphi 0, %s180
      %s183 = sphi 0, %s182
      %s197 = sphi 0, %s183
      %s201 = sphi 0, %s201
      %s203 = sphi 0, %s201
      %s204 = sphi 0, %s203
      %s218 = sphi 0, %s204
      %s222 = sphi 0, %s222
      %s224 = sphi 0, %s222
      %s225 = sphi 0, %s224
      %s239 = sphi 0, %s225
      %s243 = sphi 0, %s243
      %s245 = sphi 0, %s243
      %s246 = sphi 0, %s245
      %s260 = sphi 0, %s246
      %s266 = sphi 0, %s268
      %s269 = sphi 0, %s266
      %s270 = sphi 0, %s269
      %s286 = sphi 0, %s270
    $region4: #{tpu_custom_call.1} parent=1 // loop_header_branch
      %23 = sbr.rel (%p21) target = $region8
    $region5: #{tpu_custom_call.1} parent=1 // loop_body
      %s25 = ssub.s32 %s20, 1
      %s26 = ssub.s32 %s20, 2
      %s27 = sadd.s32 %s20, 1
      %s28 = ssub.s32 %s20, %s27
      %p29 = scmp.eq.s32.totalorder %s28, 0
      %s31 = sadd.s32 %s30, 1
      %s32 = scalar_select %p29, %s30, %s31
      %p35 = pneg %p29
      %p36 = scmp.eq.s32.totalorder %s20, 1
      %p37 = por %p35, %p36
      %p38 = scmp.ne.s32.totalorder %s30, %s33
      %p39 = scmp.eq.s32.totalorder %s20, 0
      %p40 = por %p38, %p39
      %p41 = scmp.ne.s32.totalorder %s30, %s33
      %p42 = scmp.eq.s32.totalorder %s25, 1
      %p43 = por %p41, %p42
      %p44 = scmp.ne.s32.totalorder %s33, %s34
      %p45 = scmp.eq.s32.totalorder %s25, 0
      %p46 = por %p44, %p45
      %p47 = scmp.ne.s32.totalorder %s33, %s34
      %p48 = scmp.eq.s32.totalorder %s26, 1
      %p49 = por %p47, %p48
      %p51 = scmp.ne.s32.totalorder %s34, %s50
      %p52 = scmp.eq.s32.totalorder %s26, 0
      %p53 = por %p51, %p52
      %s55 = sadd.s32 %s54, 1
      %p58 = scmp.eq.s32.totalorder %s20, 1
      %p59 = scmp.ne.s32.totalorder %s54, %s56
      %p60 = scmp.eq.s32.totalorder %s20, 0
      %p61 = por %p59, %p60
      %p62 = scmp.ne.s32.totalorder %s54, %s56
      %p63 = scmp.eq.s32.totalorder %s25, 1
      %p64 = por %p62, %p63
      %p65 = scmp.ne.s32.totalorder %s56, %s57
      %p66 = scmp.eq.s32.totalorder %s25, 0
      %p67 = por %p65, %p66
      %p68 = scmp.ne.s32.totalorder %s56, %s57
      %p69 = scmp.eq.s32.totalorder %s26, 1
      %p70 = por %p68, %p69
      %p72 = scmp.ne.s32.totalorder %s57, %s71
      %p73 = scmp.eq.s32.totalorder %s26, 0
      %p74 = por %p72, %p73
      %s76 = sadd.s32 %s75, 1
      %p79 = scmp.eq.s32.totalorder %s20, 1
      %p80 = scmp.ne.s32.totalorder %s75, %s77
      %p81 = scmp.eq.s32.totalorder %s20, 0
      %p82 = por %p80, %p81
      %p83 = scmp.ne.s32.totalorder %s75, %s77
      %p84 = scmp.eq.s32.totalorder %s25, 1
      %p85 = por %p83, %p84
      %p86 = scmp.ne.s32.totalorder %s77, %s78
      %p87 = scmp.eq.s32.totalorder %s25, 0
      %p88 = por %p86, %p87
      %p89 = scmp.ne.s32.totalorder %s77, %s78
      %p90 = scmp.eq.s32.totalorder %s26, 1
      %p91 = por %p89, %p90
      %p93 = scmp.ne.s32.totalorder %s78, %s92
      %p94 = scmp.eq.s32.totalorder %s26, 0
      %p95 = por %p93, %p94
      %s97 = sadd.s32 %s96, 1
      %p100 = scmp.eq.s32.totalorder %s20, 1
      %p101 = scmp.ne.s32.totalorder %s96, %s98
      %p102 = scmp.eq.s32.totalorder %s20, 0
      %p103 = por %p101, %p102
      %p104 = scmp.ne.s32.totalorder %s96, %s98
      %p105 = scmp.eq.s32.totalorder %s25, 1
      %p106 = por %p104, %p105
      %p107 = scmp.ne.s32.totalorder %s98, %s99
      %p108 = scmp.eq.s32.totalorder %s25, 0
      %p109 = por %p107, %p108
      %p110 = scmp.ne.s32.totalorder %s98, %s99
      %p111 = scmp.eq.s32.totalorder %s26, 1
      %p112 = por %p110, %p111
      %p114 = scmp.ne.s32.totalorder %s99, %s113
      %p115 = scmp.eq.s32.totalorder %s26, 0
      %p116 = por %p114, %p115
      %s118 = sadd.s32 %s117, 1
      %p121 = scmp.eq.s32.totalorder %s20, 1
      %p122 = scmp.ne.s32.totalorder %s117, %s119
      %p123 = scmp.eq.s32.totalorder %s20, 0
      %p124 = por %p122, %p123
      %p125 = scmp.ne.s32.totalorder %s117, %s119
      %p126 = scmp.eq.s32.totalorder %s25, 1
      %p127 = por %p125, %p126
      %p128 = scmp.ne.s32.totalorder %s119, %s120
      %p129 = scmp.eq.s32.totalorder %s25, 0
      %p130 = por %p128, %p129
      %p131 = scmp.ne.s32.totalorder %s119, %s120
      %p132 = scmp.eq.s32.totalorder %s26, 1
      %p133 = por %p131, %p132
      %p135 = scmp.ne.s32.totalorder %s120, %s134
      %p136 = scmp.eq.s32.totalorder %s26, 0
      %p137 = por %p135, %p136
      %s139 = sadd.s32 %s138, 1
      %p142 = scmp.eq.s32.totalorder %s20, 1
      %p143 = scmp.ne.s32.totalorder %s138, %s140
      %p144 = scmp.eq.s32.totalorder %s20, 0
      %p145 = por %p143, %p144
      %p146 = scmp.ne.s32.totalorder %s138, %s140
      %p147 = scmp.eq.s32.totalorder %s25, 1
      %p148 = por %p146, %p147
      %p149 = scmp.ne.s32.totalorder %s140, %s141
      %p150 = scmp.eq.s32.totalorder %s25, 0
      %p151 = por %p149, %p150
      %p152 = scmp.ne.s32.totalorder %s140, %s141
      %p153 = scmp.eq.s32.totalorder %s26, 1
      %p154 = por %p152, %p153
      %p156 = scmp.ne.s32.totalorder %s141, %s155
      %p157 = scmp.eq.s32.totalorder %s26, 0
      %p158 = por %p156, %p157
      %s160 = sadd.s32 %s159, 1
      %p163 = scmp.eq.s32.totalorder %s20, 1
      %p164 = scmp.ne.s32.totalorder %s159, %s161
      %p165 = scmp.eq.s32.totalorder %s20, 0
      %p166 = por %p164, %p165
      %p167 = scmp.ne.s32.totalorder %s159, %s161
      %p168 = scmp.eq.s32.totalorder %s25, 1
      %p169 = por %p167, %p168
      %p170 = scmp.ne.s32.totalorder %s161, %s162
      %p171 = scmp.eq.s32.totalorder %s25, 0
      %p172 = por %p170, %p171
      %p173 = scmp.ne.s32.totalorder %s161, %s162
      %p174 = scmp.eq.s32.totalorder %s26, 1
      %p175 = por %p173, %p174
      %p177 = scmp.ne.s32.totalorder %s162, %s176
      %p178 = scmp.eq.s32.totalorder %s26, 0
      %p179 = por %p177, %p178
      %s181 = sadd.s32 %s180, 1
      %p184 = scmp.eq.s32.totalorder %s20, 1
      %p185 = scmp.ne.s32.totalorder %s180, %s182
      %p186 = scmp.eq.s32.totalorder %s20, 0
      %p187 = por %p185, %p186
      %p188 = scmp.ne.s32.totalorder %s180, %s182
      %p189 = scmp.eq.s32.totalorder %s25, 1
      %p190 = por %p188, %p189
      %p191 = scmp.ne.s32.totalorder %s182, %s183
      %p192 = scmp.eq.s32.totalorder %s25, 0
      %p193 = por %p191, %p192
      %p194 = scmp.ne.s32.totalorder %s182, %s183
      %p195 = scmp.eq.s32.totalorder %s26, 1
      %p196 = por %p194, %p195
      %p198 = scmp.ne.s32.totalorder %s183, %s197
      %p199 = scmp.eq.s32.totalorder %s26, 0
      %p200 = por %p198, %p199
      %s202 = sadd.s32 %s201, 1
      %p205 = scmp.eq.s32.totalorder %s20, 1
      %p206 = scmp.ne.s32.totalorder %s201, %s203
      %p207 = scmp.eq.s32.totalorder %s20, 0
      %p208 = por %p206, %p207
      %p209 = scmp.ne.s32.totalorder %s201, %s203
      %p210 = scmp.eq.s32.totalorder %s25, 1
      %p211 = por %p209, %p210
      %p212 = scmp.ne.s32.totalorder %s203, %s204
      %p213 = scmp.eq.s32.totalorder %s25, 0
      %p214 = por %p212, %p213
      %p215 = scmp.ne.s32.totalorder %s203, %s204
      %p216 = scmp.eq.s32.totalorder %s26, 1
      %p217 = por %p215, %p216
      %p219 = scmp.ne.s32.totalorder %s204, %s218
      %p220 = scmp.eq.s32.totalorder %s26, 0
      %p221 = por %p219, %p220
      %s223 = sadd.s32 %s222, 1
      %p226 = scmp.eq.s32.totalorder %s20, 1
      %p227 = scmp.ne.s32.totalorder %s222, %s224
      %p228 = scmp.eq.s32.totalorder %s20, 0
      %p229 = por %p227, %p228
      %p230 = scmp.ne.s32.totalorder %s222, %s224
      %p231 = scmp.eq.s32.totalorder %s25, 1
      %p232 = por %p230, %p231
      %p233 = scmp.ne.s32.totalorder %s224, %s225
      %p234 = scmp.eq.s32.totalorder %s25, 0
      %p235 = por %p233, %p234
      %p236 = scmp.ne.s32.totalorder %s224, %s225
      %p237 = scmp.eq.s32.totalorder %s26, 1
      %p238 = por %p236, %p237
      %p240 = scmp.ne.s32.totalorder %s225, %s239
      %p241 = scmp.eq.s32.totalorder %s26, 0
      %p242 = por %p240, %p241
      %s244 = sadd.s32 %s243, 1
      %p247 = scmp.eq.s32.totalorder %s20, 1
      %p248 = scmp.ne.s32.totalorder %s243, %s245
      %p249 = scmp.eq.s32.totalorder %s20, 0
      %p250 = por %p248, %p249
      %p251 = scmp.ne.s32.totalorder %s243, %s245
      %p252 = scmp.eq.s32.totalorder %s25, 1
      %p253 = por %p251, %p252
      %p254 = scmp.ne.s32.totalorder %s245, %s246
      %p255 = scmp.eq.s32.totalorder %s25, 0
      %p256 = por %p254, %p255
      %p257 = scmp.ne.s32.totalorder %s245, %s246
      %p258 = scmp.eq.s32.totalorder %s26, 1
      %p259 = por %p257, %p258
      %p261 = scmp.ne.s32.totalorder %s246, %s260
      %p262 = scmp.eq.s32.totalorder %s26, 0
      %p263 = por %p261, %p262
      %s264 = ssub.s32 %s20, %s27
      %p265 = scmp.eq.s32.totalorder %s264, 0
      %s267 = sadd.s32 %s266, 1
      %s268 = scalar_select %p265, %s266, %s267
      %p271 = pneg %p265
      %p272 = scmp.eq.s32.totalorder %s20, 1
      %p273 = por %p271, %p272
      %p274 = scmp.ne.s32.totalorder %s266, %s269
      %p275 = scmp.eq.s32.totalorder %s20, 0
      %p276 = por %p274, %p275
      %p277 = scmp.ne.s32.totalorder %s266, %s269
      %p278 = scmp.eq.s32.totalorder %s25, 1
      %p279 = por %p277, %p278
      %p280 = scmp.ne.s32.totalorder %s269, %s270
      %p281 = scmp.eq.s32.totalorder %s25, 0
      %p282 = por %p280, %p281
      %p283 = scmp.ne.s32.totalorder %s269, %s270
      %p284 = scmp.eq.s32.totalorder %s26, 1
      %p285 = por %p283, %p284
      %p287 = scmp.ne.s32.totalorder %s270, %s286
      %p288 = scmp.eq.s32.totalorder %s26, 0
      %p289 = por %p287, %p288
      %p290 = scmp.le.s32.totalorder 1, %s20
      %p291 = scmp.lt.s32.totalorder %s20, 3
      %p292 = pnand %p290, %p291
      %p293 = pneg %p292
      // Predicated region
      $region9: #{tpu_custom_call.1} parent=5 // pred_check
        _
      $region10: #{tpu_custom_call.1} parent=5 // pred_check_branch
        %295 = sbr.rel (%p292) target = $region12
      $region11: #{tpu_custom_call.1} parent=5 // pred_region
        %s296 = ssub.s32 %s20, 1
        // Predicated region
        $region13: #{tpu_custom_call.1} parent=11 // pred_check
          %p297 = pneg %p67
        $region14: #{tpu_custom_call.1} parent=11 // pred_check_branch
          %299 = sbr.rel (%p297) target = $region16
        $region15: #{tpu_custom_call.1} parent=11 // pred_region
          _
        $region16: #{tpu_custom_call.1} parent=11 // pred_fallthru
          _
        // Predicated region
        $region17: #{tpu_custom_call.1} parent=11 // pred_check
          %p300 = pneg %p88
        $region18: #{tpu_custom_call.1} parent=11 // pred_check_branch
          %302 = sbr.rel (%p300) target = $region20
        $region19: #{tpu_custom_call.1} parent=11 // pred_region
          _
        $region20: #{tpu_custom_call.1} parent=11 // pred_fallthru
          _
        // Predicated region
        $region21: #{tpu_custom_call.1} parent=11 // pred_check
          %p303 = pneg %p109
        $region22: #{tpu_custom_call.1} parent=11 // pred_check_branch
          %305 = sbr.rel (%p303) target = $region24
        $region23: #{tpu_custom_call.1} parent=11 // pred_region
          _
        $region24: #{tpu_custom_call.1} parent=11 // pred_fallthru
          _
        // Predicated region
        $region25: #{tpu_custom_call.1} parent=11 // pred_check
          %p306 = pneg %p130
        $region26: #{tpu_custom_call.1} parent=11 // pred_check_branch
          %308 = sbr.rel (%p306) target = $region28
        $region27: #{tpu_custom_call.1} parent=11 // pred_region
          _
        $region28: #{tpu_custom_call.1} parent=11 // pred_fallthru
          _
        // Predicated region
        $region29: #{tpu_custom_call.1} parent=11 // pred_check
          %p309 = pneg %p151
        $region30: #{tpu_custom_call.1} parent=11 // pred_check_branch
          %311 = sbr.rel (%p309) target = $region32
        $region31: #{tpu_custom_call.1} parent=11 // pred_region
          _
        $region32: #{tpu_custom_call.1} parent=11 // pred_fallthru
          _
        // Predicated region
        $region33: #{tpu_custom_call.1} parent=11 // pred_check
          %p312 = pneg %p172
        $region34: #{tpu_custom_call.1} parent=11 // pred_check_branch
          %314 = sbr.rel (%p312) target = $region36
        $region35: #{tpu_custom_call.1} parent=11 // pred_region
          _
        $region36: #{tpu_custom_call.1} parent=11 // pred_fallthru
          _
        // Predicated region
        $region37: #{tpu_custom_call.1} parent=11 // pred_check
          %p315 = pneg %p193
        $region38: #{tpu_custom_call.1} parent=11 // pred_check_branch
          %317 = sbr.rel (%p315) target = $region40
        $region39: #{tpu_custom_call.1} parent=11 // pred_region
          _
        $region40: #{tpu_custom_call.1} parent=11 // pred_fallthru
          _
        // Predicated region
        $region41: #{tpu_custom_call.1} parent=11 // pred_check
          %p318 = pneg %p214
        $region42: #{tpu_custom_call.1} parent=11 // pred_check_branch
          %320 = sbr.rel (%p318) target = $region44
        $region43: #{tpu_custom_call.1} parent=11 // pred_region
          _
        $region44: #{tpu_custom_call.1} parent=11 // pred_fallthru
          _
        // Predicated region
        $region45: #{tpu_custom_call.1} parent=11 // pred_check
          %p321 = pneg %p235
        $region46: #{tpu_custom_call.1} parent=11 // pred_check_branch
          %323 = sbr.rel (%p321) target = $region48
        $region47: #{tpu_custom_call.1} parent=11 // pred_region
          _
        $region48: #{tpu_custom_call.1} parent=11 // pred_fallthru
          _
        // Predicated region
        $region49: #{tpu_custom_call.1} parent=11 // pred_check
          %p324 = pneg %p256
        $region50: #{tpu_custom_call.1} parent=11 // pred_check_branch
          %326 = sbr.rel (%p324) target = $region52
        $region51: #{tpu_custom_call.1} parent=11 // pred_region
          _
        $region52: #{tpu_custom_call.1} parent=11 // pred_fallthru
          _
      $region12: #{tpu_custom_call.1} parent=5 // pred_fallthru
        _
      %p327 = scmp.lt.s32.totalorder %s20, 2
      // Predicated region
      $region53: #{tpu_custom_call.1} parent=5 // pred_check
        %p328 = pneg %p327
      $region54: #{tpu_custom_call.1} parent=5 // pred_check_branch
        %330 = sbr.rel (%p328) target = $region56
      $region55: #{tpu_custom_call.1} parent=5 // pred_region
        // Predicated region
        $region57: #{tpu_custom_call.1} parent=55 // pred_check
          %p331 = pneg %p40
        $region58: #{tpu_custom_call.1} parent=55 // pred_check_branch
          %333 = sbr.rel (%p331) target = $region60
        $region59: #{tpu_custom_call.1} parent=55 // pred_region
          %p334 = scmp.lt.s32.totalorder %s20, 1
          %s335 = scalar_select %p334, %s20, 1
          %s336 = smul.addr %s335, 2
          %s337 = smul.addr %s336, 8
          %s338 = scalar_lea.vmem %s0, %s337
        $region60: #{tpu_custom_call.1} parent=55 // pred_fallthru
          _
      $region56: #{tpu_custom_call.1} parent=5 // pred_fallthru
        _
      %p339 = scmp.le.s32.totalorder 1, %s20
      %p340 = scmp.lt.s32.totalorder %s20, 3
      %p341 = pnand %p339, %p340
      %p342 = pneg %p341
      // Predicated region
      $region61: #{tpu_custom_call.1} parent=5 // pred_check
        _
      $region62: #{tpu_custom_call.1} parent=5 // pred_check_branch
        %344 = sbr.rel (%p341) target = $region64
      $region63: #{tpu_custom_call.1} parent=5 // pred_region
        %s345 = ssub.s32 %s20, 1
        %p346 = scmp.lt.s32.totalorder %s25, 1
        %s347 = scalar_select %p346, %s25, 1
        %s348 = smul.addr %s347, 2
        %s349 = smul.addr %s348, 8
        %s350 = scalar_lea.vmem %s0, %s349
        %p351 = pneg %p46
        %p352 = pneg %p43
        %p353 = pneg %p67
        %p354 = pneg %p64
        %p355 = pneg %p88
        %p356 = pneg %p85
        %p357 = pneg %p109
        %p358 = pneg %p106
        %p359 = pneg %p130
        %p360 = pneg %p127
        %p361 = pneg %p151
        %p362 = pneg %p148
        %p363 = pneg %p172
        %p364 = pneg %p169
        %p365 = pneg %p193
        %p366 = pneg %p190
        %p367 = pneg %p214
        %p368 = pneg %p211
        %p369 = pneg %p235
        %p370 = pneg %p232
        %p371 = pneg %p256
        %p372 = pneg %p253
        %p373 = pneg %p282
        %p374 = pneg %p279
        %s375 = sand.u32 %s269, 1
        %s376 = scalar_lea.sflag [#allocation4], %s375
        %s377 = sand.u32 %s269, 1
        %s378 = smul.addr %s377, 16
        %s379 = scalar_lea.vmem [#allocation3], %s378
        %p380 = scmp.lt.s32.totalorder %s25, 1
        %s381 = scalar_select %p380, %s25, 1
        %s382 = smul.addr %s381, 2
        %s383 = smul.addr %s382, 8
        %s384 = scalar_lea.vmem %s0, %s383
        %v386 = vld [vmem:[%s1] sm:$0x1]
        %v387 = vld [vmem:[%s2] sm:$0x1]
        %v388 = vld [vmem:[%s384] sm:$0xff]
        %v389 = vld [vmem:[%s384 + $0x8] sm:$0xff]
        %vm390 = vcmask 261120
        %v391 = vsel %vm390, %v388, 0.0
        %392 = vadd.xlane.f32.xlu0 %v391
        %v393 = vpop.xlane.xlu0 %392
        %v394 = vsel %vm390, %v389, 0.0
        %395 = vadd.xlane.f32.xlu0 %v394
        %v396 = vpop.xlane.xlu0 %395
        %v397 = vrcp.pop 32.0
        %v398 = vmul.f32 %v393, %v397
        %v399 = vmul.f32 %v396, %v397
        %v400 = vmul.f32 %v388, %v388
        %v401 = vmul.f32 %v389, %v389
        %v402 = vsel %vm390, %v400, 0.0
        %403 = vadd.xlane.f32.xlu0 %v402
        %v404 = vpop.xlane.xlu0 %403
        %v405 = vsel %vm390, %v401, 0.0
        %406 = vadd.xlane.f32.xlu0 %v405
        %v407 = vpop.xlane.xlu0 %406
        %v408 = vmul.f32 %v404, %v397
        %v409 = vmul.f32 %v407, %v397
        %v410 = vmul.f32 %v398, %v398
        %v411 = vmul.f32 %v399, %v399
        %v412 = vsub.f32 %v408, %v410
        %v413 = vsub.f32 %v409, %v411
        %v414 = vadd.f32 %v412, 1e-05
        %v415 = vadd.f32 %v413, 1e-05
        %v416 = vrsqrt.pop %v414
        %v417 = vrsqrt.pop %v415
        %v419 = vlaneseq
        %v420 = vshrl.u32 %v419, 7
        %v421 = vsub.s32 0, %v420
        %v422 = vrot.slane %v386, %v421
        %v424 = vmul.f32 %v416, %v422
        %v425 = vmul.f32 %v417, %v422
        %v426 = vmul.f32 %v398, %v424
        %v427 = vmul.f32 %v399, %v425
        %v429 = vlaneseq
        %v430 = vshrl.u32 %v429, 7
        %v431 = vsub.s32 0, %v430
        %v432 = vrot.slane %v387, %v431
        %v434 = vsub.f32 %v432, %v426
        %v435 = vsub.f32 %v432, %v427
        %v436 = vmul.f32 %v388, %v424
        %v437 = vmul.f32 %v389, %v425
        %v438 = vadd.f32 %v436, %v434
        %v439 = vadd.f32 %v437, %v435
        %v440 = vpack.c.bf16 %v439, %v438
        %v441 = vld [vmem:[%s3] sm:$0xf]
        %v442 = vld [vmem:[%s3 + $0x4] sm:$0xf]
        %v443 = vld [vmem:[%s3 + $0x8] sm:$0xf]
        %v444 = vld [vmem:[%s3 + $0xc] sm:$0xf]
        %v445 = vld [vmem:[%s3 + $0x10] sm:$0xf]
        %v446 = vld [vmem:[%s3 + $0x14] sm:$0xf]
        %v447 = vld [vmem:[%s3 + $0x18] sm:$0xf]
        %v448 = vld [vmem:[%s3 + $0x1c] sm:$0xf]
        %v449 = vld [vmem:[%s5] sm:$0xf]
        %v450 = vld [vmem:[%s5 + $0x4] sm:$0xf]
        %v451 = vld [vmem:[%s4] sm:$0xff]
        %v452 = vld [vmem:[%s4 + $0x8] sm:$0xff]
        %v453 = vld [vmem:[%s4 + $0x10] sm:$0xff]
        %v454 = vld [vmem:[%s4 + $0x18] sm:$0xff]
        %v455 = vld [vmem:[%s4 + $0x20] sm:$0xff]
        %v456 = vld [vmem:[%s4 + $0x28] sm:$0xff]
        %v457 = vld [vmem:[%s4 + $0x30] sm:$0xff]
        %v458 = vld [vmem:[%s4 + $0x38] sm:$0xff]
        %v459 = vld [vmem:[%s6] sm:$0xff]
        %v460 = vld [vmem:[%s6 + $0x8] sm:$0xff]
        %462 = vset.pattern.permute.xlu0 0
        %463 = vperm.xlu0 %462, %v451
        %v464 = vpop.permute.xlu0 %463
        %467 = vset.pattern.permute.xlu0 0
        %468 = vperm.xlu0 %467, %v452
        %v469 = vpop.permute.xlu0 %468
        %472 = vset.pattern.permute.xlu0 0
        %473 = vperm.xlu0 %472, %v453
        %v474 = vpop.permute.xlu0 %473
        %477 = vset.pattern.permute.xlu0 0
        %478 = vperm.xlu0 %477, %v454
        %v479 = vpop.permute.xlu0 %478
        %482 = vset.pattern.permute.xlu0 0
        %483 = vperm.xlu0 %482, %v455
        %v484 = vpop.permute.xlu0 %483
        %487 = vset.pattern.permute.xlu0 0
        %488 = vperm.xlu0 %487, %v456
        %v489 = vpop.permute.xlu0 %488
        %492 = vset.pattern.permute.xlu0 0
        %493 = vperm.xlu0 %492, %v457
        %v494 = vpop.permute.xlu0 %493
        %497 = vset.pattern.permute.xlu0 0
        %498 = vperm.xlu0 %497, %v458
        %v499 = vpop.permute.xlu0 %498
        %v509 = vunpack.c.l.b16 %v441
        %v510 = vunpack.c.l.b16 %v442
        %v511 = vunpack.c.l.b16 %v443
        %v512 = vunpack.c.l.b16 %v444
        %v513 = vunpack.c.l.b16 %v445
        %v514 = vunpack.c.l.b16 %v446
        %v515 = vunpack.c.l.b16 %v447
        %v516 = vunpack.c.l.b16 %v448
        %v517 = vpack.c.b16 %v510, %v509
        %v518 = vpack.c.b16 %v512, %v511
        %v519 = vpack.c.b16 %v514, %v513
        %v520 = vpack.c.b16 %v516, %v515
        %vm521 = vcmask 130048
        %v523 = vsel %vm521, %v517, 0
        %v526 = vsel %vm521, %v518, 0
        %v529 = vsel %vm521, %v519, 0
        %v532 = vsel %vm521, %v520, 0
        %534 = vmatprep.subr.bf16.mxu0 0
        %535 = vmatpush1.bf16.msra.mxu0 %v440
        %536 = vmatprep.subr.bf16.mxu0 0
        %537 = vmatpush1.bf16.msra.mxu0 0
        %538 = vmatprep.subr.bf16.mxu0 0
        %539 = vmatpush1.bf16.msra.mxu0 0
        %540 = vmatprep.subr.bf16.mxu0 0
        %541 = vmatpush1.bf16.msra.mxu0 0
        %542 = vmatprep.subr.bf16.mxu0 0
        %543 = vmatpush1.bf16.msra.mxu0 0
        %544 = vmatprep.subr.bf16.mxu0 0
        %545 = vmatpush1.bf16.msra.mxu0 0
        %546 = vmatprep.subr.bf16.mxu0 0
        %547 = vmatpush1.bf16.msra.mxu0 0
        %548 = vmatprep.subr.bf16.mxu0 0
        %549 = vmatpush1.bf16.msra.mxu0 0
        %550 = vmatprep.subr.bf16.mxu0 0
        %551 = vmatpush1.bf16.msra.mxu0 0
        %552 = vmatprep.subr.bf16.mxu0 0
        %553 = vmatpush1.bf16.msra.mxu0 0
        %554 = vmatprep.subr.bf16.mxu0 0
        %555 = vmatpush1.bf16.msra.mxu0 0
        %556 = vmatprep.subr.bf16.mxu0 0
        %557 = vmatpush1.bf16.msra.mxu0 0
        %558 = vmatprep.subr.bf16.mxu0 0
        %559 = vmatpush1.bf16.msra.mxu0 0
        %560 = vmatprep.subr.bf16.mxu0 0
        %561 = vmatpush1.bf16.msra.mxu0 0
        %562 = vmatprep.subr.bf16.mxu0 0
        %563 = vmatpush1.bf16.msra.mxu0 0
        %564 = vmatprep.subr.bf16.mxu0 0
        %565 = vmatpush1.bf16.msra.mxu0 0
        %566 = vmatprep.mubr.bf16.mxu0 0
        %567 = vmatmul.mubr.bf16.gmra.mrb[0].mxu0 %v523
        %v568 = vpop.f32.mrb[0].mxu0
        %v569 = vadd.f32 %v464, %v568
        %v570 = vpop.f32.mrb[0].mxu0
        %v571 = vpop.f32.mrb[0].mxu0
        %v572 = vadd.f32 %v469, %v571
        %v573 = vpop.f32.mrb[0].mxu0
        %574 = vmatprep.mubr.bf16.mxu0 0
        %575 = vmatmul.mubr.bf16.gmra.mrb[0].mxu0 %v526
        %v576 = vpop.f32.mrb[0].mxu0
        %v577 = vadd.f32 %v474, %v576
        %v578 = vpop.f32.mrb[0].mxu0
        %v579 = vpop.f32.mrb[0].mxu0
        %v580 = vadd.f32 %v479, %v579
        %v581 = vpop.f32.mrb[0].mxu0
        %582 = vmatprep.mubr.bf16.mxu0 0
        %583 = vmatmul.mubr.bf16.gmra.mrb[0].mxu0 %v529
        %v584 = vpop.f32.mrb[0].mxu0
        %v585 = vadd.f32 %v484, %v584
        %v586 = vpop.f32.mrb[0].mxu0
        %v587 = vpop.f32.mrb[0].mxu0
        %v588 = vadd.f32 %v489, %v587
        %v589 = vpop.f32.mrb[0].mxu0
        %590 = vmatprep.mubr.bf16.mxu0 0
        %591 = vmatmul.mubr.bf16.gmra.mrb[0].mxu0 %v532
        %v592 = vpop.f32.mrb[0].mxu0
        %v593 = vadd.f32 %v494, %v592
        %v594 = vpop.f32.mrb[0].mxu0
        %v595 = vpop.f32.mrb[0].mxu0
        %v596 = vadd.f32 %v499, %v595
        %v597 = vpop.f32.mrb[0].mxu0
        %598 = vdwg.mxu0
        %v599 = vmul.f32 %v569, 0.5
        %v600 = vmul.f32 %v572, 0.5
        %v601 = vmul.f32 %v577, 0.5
        %v602 = vmul.f32 %v580, 0.5
        %v603 = vmul.f32 %v585, 0.5
        %v604 = vmul.f32 %v588, 0.5
        %v605 = vmul.f32 %v593, 0.5
        %v606 = vmul.f32 %v596, 0.5
        %v607 = vmul.f32 %v569, 0.70710677
        %v608 = vmul.f32 %v572, 0.70710677
        %v609 = vmul.f32 %v577, 0.70710677
        %v610 = vmul.f32 %v580, 0.70710677
        %v611 = vmul.f32 %v585, 0.70710677
        %v612 = vmul.f32 %v588, 0.70710677
        %v613 = vmul.f32 %v593, 0.70710677
        %v614 = vmul.f32 %v596, 0.70710677
        %v615 = verf.f32.pop %v607
        %v616 = verf.f32.pop %v608
        %v617 = verf.f32.pop %v609
        %v618 = verf.f32.pop %v610
        %v619 = verf.f32.pop %v611
        %v620 = verf.f32.pop %v612
        %v621 = verf.f32.pop %v613
        %v622 = verf.f32.pop %v614
        %v623 = vadd.f32 %v615, 1.0
        %v624 = vadd.f32 %v616, 1.0
        %v625 = vadd.f32 %v617, 1.0
        %v626 = vadd.f32 %v618, 1.0
        %v627 = vadd.f32 %v619, 1.0
        %v628 = vadd.f32 %v620, 1.0
        %v629 = vadd.f32 %v621, 1.0
        %v630 = vadd.f32 %v622, 1.0
        %v631 = vmul.f32 %v599, %v623
        %v632 = vmul.f32 %v600, %v624
        %v633 = vmul.f32 %v601, %v625
        %v634 = vmul.f32 %v602, %v626
        %v635 = vmul.f32 %v603, %v627
        %v636 = vmul.f32 %v604, %v628
        %v637 = vmul.f32 %v605, %v629
        %v638 = vmul.f32 %v606, %v630
        %v639 = vpack.c.bf16 %v632, %v631
        %v640 = vpack.c.bf16 %v634, %v633
        %v641 = vpack.c.bf16 %v636, %v635
        %v642 = vpack.c.bf16 %v638, %v637
        %v645 = vunpack.c.l.b16 %v449
        %v646 = vunpack.c.l.b16 %v450
        %v647 = vpack.c.b16 %v646, %v645
        %vm648 = vcmask 523264
        %v650 = vsel %vm648, %v647, 0
        %652 = vmatprep.subr.bf16.mxu0 0
        %653 = vmatpush1.bf16.msra.mxu0 %v639
        %654 = vmatprep.subr.bf16.mxu0 0
        %655 = vmatpush1.bf16.msra.mxu0 %v640
        %656 = vmatprep.subr.bf16.mxu0 0
        %657 = vmatpush1.bf16.msra.mxu0 %v641
        %658 = vmatprep.subr.bf16.mxu0 0
        %659 = vmatpush1.bf16.msra.mxu0 %v642
        %660 = vmatprep.subr.bf16.mxu0 0
        %661 = vmatpush1.bf16.msra.mxu0 0
        %662 = vmatprep.subr.bf16.mxu0 0
        %663 = vmatpush1.bf16.msra.mxu0 0
        %664 = vmatprep.subr.bf16.mxu0 0
        %665 = vmatpush1.bf16.msra.mxu0 0
        %666 = vmatprep.subr.bf16.mxu0 0
        %667 = vmatpush1.bf16.msra.mxu0 0
        %668 = vmatprep.subr.bf16.mxu0 0
        %669 = vmatpush1.bf16.msra.mxu0 0
        %670 = vmatprep.subr.bf16.mxu0 0
        %671 = vmatpush1.bf16.msra.mxu0 0
        %672 = vmatprep.subr.bf16.mxu0 0
        %673 = vmatpush1.bf16.msra.mxu0 0
        %674 = vmatprep.subr.bf16.mxu0 0
        %675 = vmatpush1.bf16.msra.mxu0 0
        %676 = vmatprep.subr.bf16.mxu0 0
        %677 = vmatpush1.bf16.msra.mxu0 0
        %678 = vmatprep.subr.bf16.mxu0 0
        %679 = vmatpush1.bf16.msra.mxu0 0
        %680 = vmatprep.subr.bf16.mxu0 0
        %681 = vmatpush1.bf16.msra.mxu0 0
        %682 = vmatprep.subr.bf16.mxu0 0
        %683 = vmatpush1.bf16.msra.mxu0 0
        %684 = vmatprep.mubr.bf16.mxu0 0
        %685 = vmatmul.mubr.bf16.gmra.mrb[0].mxu0 %v650
        %v686 = vpop.f32.mrb[0].mxu0
        %v687 = vadd.f32 0.0, %v686
        %v688 = vpop.f32.mrb[0].mxu0
        %v689 = vpop.f32.mrb[0].mxu0
        %v690 = vadd.f32 0.0, %v689
        %v691 = vpop.f32.mrb[0].mxu0
        %692 = vdwg.mxu0
        %v693 = vadd.f32 %v388, %v687
        %v694 = vadd.f32 %v389, %v690
        %696 = vset.pattern.permute.xlu0 0
        %697 = vperm.xlu0 %696, %v459
        %v698 = vpop.permute.xlu0 %697
        %701 = vset.pattern.permute.xlu0 0
        %702 = vperm.xlu0 %701, %v460
        %v703 = vpop.permute.xlu0 %702
        %v705 = vadd.f32 %v693, %v698
        %v706 = vadd.f32 %v694, %v703
        %707 = vst.msk [vmem:[#allocation2] sm:$0xff] %vm390, %v705
        %708 = vst.msk [vmem:[#allocation2 + $0x8] sm:$0xff] %vm390, %v706
        %v709 = vld [vmem:[#allocation2] sm:$0xff]
        %v710 = vld [vmem:[#allocation2 + $0x8] sm:$0xff]
        %v711 = vsel %vm390, %v709, 0.0
        %712 = vadd.xlane.f32.xlu0 %v711
        %v713 = vpop.xlane.xlu0 %712
        %v714 = vsel %vm390, %v710, 0.0
        %715 = vadd.xlane.f32.xlu0 %v714
        %v716 = vpop.xlane.xlu0 %715
        %v717 = vmul.f32 %v713, %v397
        %v718 = vmul.f32 %v716, %v397
        %v719 = vmul.f32 %v709, %v709
        %v720 = vmul.f32 %v710, %v710
        %v721 = vsel %vm390, %v719, 0.0
        %722 = vadd.xlane.f32.xlu0 %v721
        %v723 = vpop.xlane.xlu0 %722
        %v724 = vsel %vm390, %v720, 0.0
        %725 = vadd.xlane.f32.xlu0 %v724
        %v726 = vpop.xlane.xlu0 %725
        %v727 = vmul.f32 %v723, %v397
        %v728 = vmul.f32 %v726, %v397
        %v729 = vmul.f32 %v717, %v717
        %v730 = vmul.f32 %v718, %v718
        %v731 = vsub.f32 %v727, %v729
        %v732 = vsub.f32 %v728, %v730
        %v733 = vadd.f32 %v731, 1e-05
        %v734 = vadd.f32 %v732, 1e-05
        %v735 = vrsqrt.pop %v733
        %v736 = vrsqrt.pop %v734
        %v737 = vmul.f32 %v735, %v422
        %v738 = vmul.f32 %v736, %v422
        %v739 = vmul.f32 %v717, %v737
        %v740 = vmul.f32 %v718, %v738
        %v741 = vsub.f32 %v432, %v739
        %v742 = vsub.f32 %v432, %v740
        %v743 = vmul.f32 %v709, %v737
        %v744 = vmul.f32 %v710, %v738
        %v745 = vadd.f32 %v743, %v741
        %v746 = vadd.f32 %v744, %v742
        %v747 = vpack.c.bf16 %v746, %v745
        %v748 = vld [vmem:[%s7] sm:$0xf]
        %v749 = vld [vmem:[%s7 + $0x4] sm:$0xf]
        %v750 = vld [vmem:[%s7 + $0x8] sm:$0xf]
        %v751 = vld [vmem:[%s7 + $0xc] sm:$0xf]
        %v752 = vld [vmem:[%s8] sm:$0x1]
        %v754 = vlaneseq
        %v755 = vshrl.u32 %v754, 7
        %v756 = vsub.s32 0, %v755
        %v757 = vrot.slane %v752, %v756
        %v763 = vunpack.c.l.b16 %v748
        %v764 = vunpack.c.l.b16 %v749
        %v765 = vunpack.c.l.b16 %v750
        %v766 = vunpack.c.l.b16 %v751
        %v767 = vpack.c.b16 %v764, %v763
        %v768 = vpack.c.b16 %v766, %v765
        %v772 = vsel %vm390, %v747, 0
        %774 = vmatprep.subr.bf16.mxu0 0
        %775 = vmatpush1.bf16.msra.mxu0 %v767
        %776 = vmatprep.subr.bf16.mxu0 0
        %777 = vmatpush1.bf16.msra.mxu0 %v768
        %778 = vmatprep.subr.bf16.mxu0 0
        %779 = vmatpush1.bf16.msra.mxu0 0
        %780 = vmatprep.subr.bf16.mxu0 0
        %781 = vmatpush1.bf16.msra.mxu0 0
        %782 = vmatprep.subr.bf16.mxu0 0
        %783 = vmatpush1.bf16.msra.mxu0 0
        %784 = vmatprep.subr.bf16.mxu0 0
        %785 = vmatpush1.bf16.msra.mxu0 0
        %786 = vmatprep.subr.bf16.mxu0 0
        %787 = vmatpush1.bf16.msra.mxu0 0
        %788 = vmatprep.subr.bf16.mxu0 0
        %789 = vmatpush1.bf16.msra.mxu0 0
        %790 = vmatprep.subr.bf16.mxu0 0
        %791 = vmatpush1.bf16.msra.mxu0 0
        %792 = vmatprep.subr.bf16.mxu0 0
        %793 = vmatpush1.bf16.msra.mxu0 0
        %794 = vmatprep.subr.bf16.mxu0 0
        %795 = vmatpush1.bf16.msra.mxu0 0
        %796 = vmatprep.subr.bf16.mxu0 0
        %797 = vmatpush1.bf16.msra.mxu0 0
        %798 = vmatprep.subr.bf16.mxu0 0
        %799 = vmatpush1.bf16.msra.mxu0 0
        %800 = vmatprep.subr.bf16.mxu0 0
        %801 = vmatpush1.bf16.msra.mxu0 0
        %802 = vmatprep.subr.bf16.mxu0 0
        %803 = vmatpush1.bf16.msra.mxu0 0
        %804 = vmatprep.subr.bf16.mxu0 0
        %805 = vmatpush1.bf16.msra.mxu0 0
        %806 = vmatprep.mubr.bf16.mxu0 0
        %807 = vmatmul.mubr.bf16.gmra.mrb[0].mxu0 %v772
        %v808 = vpop.f32.mrb[0].mxu0
        %v809 = vadd.f32 %v757, %v808
        %v810 = vpop.f32.mrb[0].mxu0
        %v811 = vpop.f32.mrb[0].mxu0
        %v812 = vadd.f32 %v757, %v811
        %v813 = vpop.f32.mrb[0].mxu0
        %814 = vdwg.mxu0
        %v815 = vmul.f32 %v809, 0.5
        %v816 = vmul.f32 %v812, 0.5
        %v817 = vmul.f32 %v809, 0.70710677
        %v818 = vmul.f32 %v812, 0.70710677
        %v819 = verf.f32.pop %v817
        %v820 = verf.f32.pop %v818
        %v821 = vadd.f32 %v819, 1.0
        %v822 = vadd.f32 %v820, 1.0
        %v823 = vmul.f32 %v815, %v821
        %v824 = vmul.f32 %v816, %v822
        %v825 = vpack.c.bf16 %v824, %v823
        %v826 = vld [vmem:[%s9] sm:$0xf]
        %v827 = vld [vmem:[%s9 + $0x4] sm:$0xf]
        %v828 = vld [vmem:[%s9 + $0x8] sm:$0xf]
        %v829 = vld [vmem:[%s9 + $0xc] sm:$0xf]
        %v830 = vld [vmem:[%s9 + $0x10] sm:$0xf]
        %v831 = vld [vmem:[%s9 + $0x14] sm:$0xf]
        %v832 = vld [vmem:[%s9 + $0x18] sm:$0xf]
        %v833 = vld [vmem:[%s9 + $0x1c] sm:$0xf]
        %v834 = vld [vmem:[%s9 + $0x20] sm:$0xf]
        %v835 = vld [vmem:[%s9 + $0x24] sm:$0xf]
        %v836 = vld [vmem:[%s9 + $0x28] sm:$0xf]
        %v837 = vld [vmem:[%s9 + $0x2c] sm:$0xf]
        %v838 = vld [vmem:[%s9 + $0x30] sm:$0xf]
        %v839 = vld [vmem:[%s9 + $0x34] sm:$0xf]
        %v840 = vld [vmem:[%s9 + $0x38] sm:$0xf]
        %v841 = vld [vmem:[%s9 + $0x3c] sm:$0xf]
        %v842 = vld [vmem:[%s10] sm:$0x1]
        %v844 = vlaneseq
        %v845 = vshrl.u32 %v844, 7
        %v846 = vsub.s32 0, %v845
        %v847 = vrot.slane %v842, %v846
        %v865 = vunpack.c.l.b16 %v826
        %v866 = vunpack.c.l.b16 %v827
        %v867 = vunpack.c.l.b16 %v828
        %v868 = vunpack.c.l.b16 %v829
        %v869 = vunpack.c.l.b16 %v830
        %v870 = vunpack.c.l.b16 %v831
        %v871 = vunpack.c.l.b16 %v832
        %v872 = vunpack.c.l.b16 %v833
        %v873 = vunpack.c.l.b16 %v834
        %v874 = vunpack.c.l.b16 %v835
        %v875 = vunpack.c.l.b16 %v836
        %v876 = vunpack.c.l.b16 %v837
        %v877 = vunpack.c.l.b16 %v838
        %v878 = vunpack.c.l.b16 %v839
        %v879 = vunpack.c.l.b16 %v840
        %v880 = vunpack.c.l.b16 %v841
        %v881 = vpack.c.b16 %v866, %v865
        %v882 = vpack.c.b16 %v868, %v867
        %v883 = vpack.c.b16 %v870, %v869
        %v884 = vpack.c.b16 %v872, %v871
        %v885 = vpack.c.b16 %v874, %v873
        %v886 = vpack.c.b16 %v876, %v875
        %v887 = vpack.c.b16 %v878, %v877
        %v888 = vpack.c.b16 %v880, %v879
        %897 = vmatprep.subr.bf16.mxu0 0
        %898 = vmatpush1.bf16.msra.mxu0 %v881
        %899 = vmatprep.subr.bf16.mxu0 0
        %900 = vmatpush1.bf16.msra.mxu0 %v882
        %901 = vmatprep.subr.bf16.mxu0 0
        %902 = vmatpush1.bf16.msra.mxu0 %v883
        %903 = vmatprep.subr.bf16.mxu0 0
        %904 = vmatpush1.bf16.msra.mxu0 %v884
        %905 = vmatprep.subr.bf16.mxu0 0
        %906 = vmatpush1.bf16.msra.mxu0 %v885
        %907 = vmatprep.subr.bf16.mxu0 0
        %908 = vmatpush1.bf16.msra.mxu0 %v886
        %909 = vmatprep.subr.bf16.mxu0 0
        %910 = vmatpush1.bf16.msra.mxu0 %v887
        %911 = vmatprep.subr.bf16.mxu0 0
        %912 = vmatpush1.bf16.msra.mxu0 %v888
        %913 = vmatprep.subr.bf16.mxu0 0
        %914 = vmatpush1.bf16.msra.mxu0 0
        %915 = vmatprep.subr.bf16.mxu0 0
        %916 = vmatpush1.bf16.msra.mxu0 0
        %917 = vmatprep.subr.bf16.mxu0 0
        %918 = vmatpush1.bf16.msra.mxu0 0
        %919 = vmatprep.subr.bf16.mxu0 0
        %920 = vmatpush1.bf16.msra.mxu0 0
        %921 = vmatprep.subr.bf16.mxu0 0
        %922 = vmatpush1.bf16.msra.mxu0 0
        %923 = vmatprep.subr.bf16.mxu0 0
        %924 = vmatpush1.bf16.msra.mxu0 0
        %925 = vmatprep.subr.bf16.mxu0 0
        %926 = vmatpush1.bf16.msra.mxu0 0
        %927 = vmatprep.subr.bf16.mxu0 0
        %928 = vmatpush1.bf16.msra.mxu0 0
        %929 = vmatprep.mubr.bf16.mxu0 0
        %930 = vmatmul.mubr.bf16.gmra.mrb[0].mxu0 %v825
        %v931 = vpop.f32.mrb[0].mxu0
        %v932 = vadd.f32 %v847, %v931
        %v933 = vpop.f32.mrb[0].mxu0
        %v934 = vpop.f32.mrb[0].mxu0
        %v935 = vadd.f32 %v847, %v934
        %v936 = vpop.f32.mrb[0].mxu0
        %937 = vdwg.mxu0
        %v938 = vadd.f32 %v709, %v932
        %v939 = vadd.f32 %v710, %v935
        %940 = vst.msk [vmem:[%s379] sm:$0xff] %vm390, %v938
        %941 = vst.msk [vmem:[%s379 + $0x8] sm:$0xff] %vm390, %v939
        %s942 = sand.u32 %s269, 1
        %s943 = scalar_lea.sflag [#allocation4], %s942
        %s944 = sand.u32 %s269, 1
        %s945 = smul.addr %s944, 16
        %s946 = scalar_lea.vmem [#allocation3], %s945
        // Predicated region
        $region65: #{tpu_custom_call.1} parent=63 // pred_check
          %p947 = pneg %p279
        $region66: #{tpu_custom_call.1} parent=63 // pred_check_branch
          %949 = sbr.rel (%p947) target = $region68
        $region67: #{tpu_custom_call.1} parent=63 // pred_region
          %s951 = ssub.s32 256, 256
          %952 = vsyncadd %s943, %s951
          %s953 = smul.addr %s25, 2
          %s954 = smul.addr %s953, 128
          %s955 = scalar_lea.hbm %s11, %s954
          %s956 = sshll.u32 %s946, 4
          %s957 = int_to_ptr.vmem [resolvable:$true] %s956
          %962 = dma.vmem_to_hbm [thread:$0]  %s957, 256, %s955, %s943, 128, 128, 8
        $region68: #{tpu_custom_call.1} parent=63 // pred_fallthru
          _
      $region64: #{tpu_custom_call.1} parent=5 // pred_fallthru
        _
      %p963 = scmp.le.s32.totalorder 2, %s20
      // Predicated region
      $region69: #{tpu_custom_call.1} parent=5 // pred_check
        %p964 = pneg %p963
      $region70: #{tpu_custom_call.1} parent=5 // pred_check_branch
        %966 = sbr.rel (%p964) target = $region72
      $region71: #{tpu_custom_call.1} parent=5 // pred_region
        %s967 = ssub.s32 %s20, 2
        // Predicated region
        $region73: #{tpu_custom_call.1} parent=71 // pred_check
          %p968 = pneg %p285
        $region74: #{tpu_custom_call.1} parent=71 // pred_check_branch
          %970 = sbr.rel (%p968) target = $region76
        $region75: #{tpu_custom_call.1} parent=71 // pred_region
          %s971 = sand.u32 %s270, 1
          %s972 = scalar_lea.sflag [#allocation4], %s971
          %s973 = sand.u32 %s270, 1
          %s974 = smul.addr %s973, 16
          %s975 = scalar_lea.vmem [#allocation3], %s974
          %976 = dma.done %s972, 256
        $region76: #{tpu_custom_call.1} parent=71 // pred_fallthru
          _
      $region72: #{tpu_custom_call.1} parent=5 // pred_fallthru
        _
    $region6: #{tpu_custom_call.1} parent=1 // loop_footer
      %s24 = sadd.s32 1, %s20
    $region7: #{tpu_custom_call.1} parent=1 // loop_footer_branch
      %19 = sbr.rel target = $region3
    $region8: #{tpu_custom_call.1} parent=1 // loop_exit
      _
    %977 = vsyncpa [#allocation4], 1
    %s978 = scalar_lea.sflag [#allocation4], 1
    %979 = vsyncpa %s978, 1

</llo_original>
